<compile_context>
chip_gen: v6e
topology: v6e:2x2x1
jax: 0.10.0
libtpu: 0.0.40
codegen_flags: <defaults>
</compile_context>

<pallas_src>
import jax
import jax.numpy as jnp
from jax import lax
from jax.experimental import pallas as pl
from jax.experimental.pallas import tpu as pltpu

EPS = 1e-6


def _round_up(a, b):
    return (a + b - 1) // b * b


def _tpu_generation():
    try:
        kind = jax.devices()[0].device_kind.lower()
    except Exception:
        return 0
    for g in (7, 6, 5, 4, 3, 2):
        if "v%d" % g in kind:
            return g
    return 0


def _tpu_vmem_bytes(gen):
    try:
        return int(pltpu.get_tpu_info().vmem_capacity_bytes)
    except Exception:
        if gen in (5, 6):
            return 128 << 20
        return 64 << 20  # v7x per-TensorCore VMEM; safe floor for unknown chips


def _make_kernel(d_real, eps, separate_residual):
    inv_d = 1.0 / d_real
    inv_dm1 = 1.0 / max(d_real - 1, 1)

    def _layernorm_into(y_ref, x_ref, a2_ref, b2_ref):
        x = x_ref[...].astype(jnp.float32)
        dp = x.shape[-1]
        if dp != d_real:
            lane = lax.broadcasted_iota(jnp.int32, (1, dp), 1)
            xm = jnp.where(lane < d_real, x, 0.0)  # mask padded lanes once
        else:
            xm = x
        # Fused single pass: sum and sum-of-squares (one sweep over the tile).
        s1 = jnp.sum(xm, axis=-1, keepdims=True)
        s2 = jnp.sum(xm * xm, axis=-1, keepdims=True)
        mean = s1 * inv_d
        var = jnp.maximum((s2 - mean * s1) * inv_dm1, 0.0)  # unbiased, torch-style
        denom = jnp.sqrt(var) + eps
        inv = pl.reciprocal(denom, approx=True)   # EUP slot, frees the VALU
        inv = inv * (2.0 - denom * inv)           # one Newton step -> ~f32 accuracy
        y = a2_ref[...] * ((x - mean) * inv) + b2_ref[...]
        # Padded lanes of a_2/b_2 are zero, so padded lanes of y are exactly 0.
        y_ref[...] = y.astype(y_ref.dtype)

    def _linear_residual(y_ref, w_ref, b_ref, x_res, o_ref):
        s = jnp.dot(y_ref[...], w_ref[...], preferred_element_type=jnp.float32)
        s = s + b_ref[...].astype(jnp.float32)
        # TODO(synk): training-mode dropout (pltpu.prng_*) not implemented; eval semantics.
        o_ref[...] = (x_res + s).astype(o_ref.dtype)

    if separate_residual:
        # grid = (rows, weight-column tiles); LayerNorm only on the first column tile,
        # then the cached normalized tile is reused for every j.
        def kernel(x_ref, xcol_ref, a2_ref, b2_ref, w_ref, b_ref, o_ref, y_ref):
            @pl.when(pl.program_id(1) == 0)
            def _():
                _layernorm_into(y_ref, x_ref, a2_ref, b2_ref)

            _linear_residual(y_ref, w_ref, b_ref,
                             xcol_ref[...].astype(jnp.float32), o_ref)
    else:
        # Whole weight resident (single column tile): LayerNorm once per row tile.
        def kernel(x_ref, a2_ref, b2_ref, w_ref, b_ref, o_ref, y_ref):
            _layernorm_into(y_ref, x_ref, a2_ref, b2_ref)
            _linear_residual(y_ref, w_ref, b_ref,
                             x_ref[...].astype(jnp.float32), o_ref)

    return kernel


def sublayer_connection(x, a2, b2, w, b, *, mxu_dtype="auto", tile_rows=None,
                        col_tile=None, eps=EPS):
    """x: [B, S, D]; a2, b2, b: [D]; w: [D, D]. Returns [B, S, D]."""
    B, S, D = x.shape
    assert D > 1, "LayerNorm with unbiased std requires D > 1"
    M = B * S
    Dp = _round_up(D, 128)

    gen = _tpu_generation()
    vmem_budget = int(_tpu_vmem_bytes(gen) * 0.8)  # headroom for Mosaic internals

    if mxu_dtype == "auto":
        # bf16 feeds the MXU at full rate on v5e/v6e/v7x, halves W DMA/VMEM.
        # LayerNorm math stays f32 regardless of this choice.
        mxu_dtype = jnp.bfloat16 if (gen >= 5 or x.dtype == jnp.bfloat16) else None
    w_dtype = jnp.dtype(mxu_dtype) if mxu_dtype is not None else jnp.dtype(w.dtype)

    xbytes = jnp.dtype(x.dtype).itemsize
    wbytes = w_dtype.itemsize
    m8 = _round_up(M, 8)

    def footprint(tm, tn, w_bufs=2):
        f = 2 * tm * Dp * xbytes            # x row tile (double-buffered)
        f += w_bufs * Dp * tn * wbytes      # weight tile(s)
        f += 2 * tm * tn * xbytes           # output tile
        f += tm * Dp * wbytes               # normalized-y VMEM scratch (single)
        if tn != Dp:
            f += 2 * tm * tn * xbytes       # residual x column tile
        f += 8 * Dp * 4                     # a_2 / b_2 / bias
        return f

    # Regime 1: whole weight resident (tn == Dp) -> W DMA'd exactly once,
    # LayerNorm once per row tile, residual aliased in place.
    tm, tn, w_bufs = None, None, 2
    res_cands = (512, 384, 256, 128, 64, 32, 16, 8) if tile_rows is None \
        else (_round_up(tile_rows, 8),)
    for cand in res_cands:
        tm_c = min(cand, m8)
        if footprint(tm_c, Dp) <= vmem_budget:
            tm, tn = tm_c, Dp
            break

    # Regime 2: column-tiled weight (large D). Raise tm so 2*tm/wbytes clears the
    # chip's FLOP/byte crossover (v6e needs the most), capped by the VMEM budget.
    if tn is None:
        if col_tile is None:
            tn = 256 if (Dp % 256 == 0 and gen != 5) else 128
        else:
            tn = min(_round_up(col_tile, 128), Dp)
        w_bufs = 3 if gen == 5 else 2       # deeper W pipeline on v5e (lowest HBM BW)
        target = {5: 512, 6: 768, 7: 512}.get(gen, 512)
        if tile_rows is not None:
            target = _round_up(tile_rows, 8)
        tm = 8
        for cand in (1024, 768, 512, 384, 256, 128, 64, 32, 16, 8):
            if cand > target:
                continue
            tm_c = min(cand, m8)
            if footprint(tm_c, tn, w_bufs) <= vmem_budget:
                tm = tm_c
                break

    n_col = Dp // tn
    Mp = _round_up(M, tm)
    n_row = Mp // tm
    grid = (n_row, n_col)
    separate_residual = n_col > 1

    # ---- operand preparation (pads skipped entirely when already aligned) ----
    pad_m, pad_d = Mp - M, Dp - D
    x2 = x.reshape(M, D)
    if pad_m or pad_d:
        x2 = jnp.pad(x2, ((0, pad_m), (0, pad_d)))

    def _vec(v):
        v = v if pad_d == 0 else jnp.pad(v, (0, pad_d))
        return v.reshape(1, Dp)

    a2p, b2p, bp = _vec(a2), _vec(b2), _vec(b)
    wp = w if pad_d == 0 else jnp.pad(w, ((0, pad_d), (0, pad_d)))
    if wp.dtype != w_dtype:
        wp = wp.astype(w_dtype)
    # TODO(synk): cache the padded / bf16-cast weight across calls when the layer is reused.

    # ---- specs ----
    in_specs = [pl.BlockSpec((tm, Dp), lambda i, j: (i, 0))]      # x rows, full width
    inputs = [x2]
    if separate_residual:
        in_specs.append(pl.BlockSpec((tm, tn), lambda i, j: (i, j)))  # residual column
        inputs.append(x2)
    if separate_residual and w_bufs != 2:
        w_spec = pl.BlockSpec((Dp, tn), lambda i, j: (0, j),
                              pipeline_mode=pl.Buffered(w_bufs))
    else:
        w_spec = pl.BlockSpec((Dp, tn), lambda i, j: (0, j))
    in_specs += [
        pl.BlockSpec((1, Dp), lambda i, j: (0, 0)),   # a_2
        pl.BlockSpec((1, Dp), lambda i, j: (0, 0)),   # b_2
        w_spec,                                       # W column tile (or whole W)
        pl.BlockSpec((1, tn), lambda i, j: (0, j)),   # bias column tile
    ]
    inputs += [a2p, b2p, wp, bp]
    out_spec = pl.BlockSpec((tm, tn), lambda i, j: (i, j))

    fp = footprint(tm, tn, w_bufs)
    vmem_limit = min(max(int(fp) + (4 << 20), 32 << 20), vmem_budget)

    # Cost estimate reflecting the *actual* traffic (W re-streamed n_row times
    # when column-tiled; x read twice in that regime).
    w_passes = n_row if separate_residual else 1
    x_passes = 3 if separate_residual else 2
    cost = pl.CostEstimate(
        flops=int(2 * Mp * Dp * Dp + 8 * Mp * Dp),
        transcendentals=int(2 * Mp),
        bytes_accessed=int(x_passes * Mp * Dp * xbytes
                           + w_passes * Dp * Dp * wbytes + 8 * Dp * 4),
    )

    kernel = _make_kernel(D, eps, separate_residual)

    # Residual-into-same-buffer aliasing: only in the resident-weight regime where
    # each x row block is read exactly once before its output rows are written.
    io_aliases = {} if separate_residual else {0: 0}

    out = pl.pallas_call(
        kernel,
        out_shape=jax.ShapeDtypeStruct((Mp, Dp), x.dtype),
        grid_spec=pltpu.PrefetchScalarGridSpec(
            num_scalar_prefetch=0,
            grid=grid,
            in_specs=in_specs,
            out_specs=out_spec,
            scratch_shapes=[pltpu.VMEM((tm, Dp), w_dtype)],  # cached LayerNorm(y)
        ),
        compiler_params=pltpu.CompilerParams(
            dimension_semantics=("parallel", "arbitrary"),
            vmem_limit_bytes=vmem_limit,
        ),
        cost_estimate=cost,
        input_output_aliases=io_aliases,
    )(*inputs)

    if pad_m or pad_d:
        out = out[:M, :D]
    return out.reshape(B, S, D)


def reference(x, a2, b2, w, b):
    # Pure-JAX reference mirroring the PyTorch forward (eval-mode dropout = identity).
    mean = jnp.mean(x, axis=-1, keepdims=True)
    std = jnp.std(x, axis=-1, keepdims=True, ddof=1)  # torch.std is unbiased
    y = a2 * (x - mean) / (std + EPS) + b2
    return x + (y @ w + b)


if __name__ == "__main__":
    key = jax.random.PRNGKey(0)
    B, S, D = 2, 8, 32  # size = hidden = 32

    kx, kw, kb = jax.random.split(key, 3)
    x = jax.random.normal(kx, (B, S, D), dtype=jnp.float32)

    # LayerNorm params: a_2 = ones, b_2 = zeros (as in __init__)
    a2 = jnp.ones((D,), dtype=jnp.float32)
    b2 = jnp.zeros((D,), dtype=jnp.float32)

    # Deterministic synthetic sublayer (Linear) params
    w = jax.random.normal(kw, (D, D), dtype=jnp.float32) * 0.05
    b = jax.random.normal(kb, (D,), dtype=jnp.float32) * 0.05

    ref = reference(x, a2, b2, w, b)

    # Full-precision MXU path (tight tolerance).
    out_f32 = jax.block_until_ready(
        sublayer_connection(x, a2, b2, w, b, mxu_dtype=jnp.float32))
    assert out_f32.shape == (B, S, D)
    assert jnp.allclose(out_f32, ref, atol=5e-4, rtol=5e-4), "f32 mismatch vs reference"

    # Default path (bf16 MXU on v5e/v6e/v7x) — looser tolerance for the bf16 matmul.
    out = jax.block_until_ready(sublayer_connection(x, a2, b2, w, b))
    assert out.shape == (B, S, D)
    assert jnp.allclose(out, ref, atol=3e-2, rtol=3e-2), "mismatch vs reference"

    print("KERNEL_OK")
</pallas_src>

<mosaic_0001>
module attributes {stable_mosaic.version = 11 : i64} {
  func.func @kernel(%arg0: i32, %arg1: i32, %arg2: memref<16x128xf32, #tpu.memory_space<vmem>>, %arg3: memref<1x128xf32, #tpu.memory_space<vmem>>, %arg4: memref<1x128xf32, #tpu.memory_space<vmem>>, %arg5: memref<128x128xf32, #tpu.memory_space<vmem>>, %arg6: memref<1x128xf32, #tpu.memory_space<vmem>>, %arg7: memref<16x128xf32, #tpu.memory_space<vmem>>, %arg8: memref<16x128xf32, #tpu.memory_space<vmem>>) attributes {dimension_semantics = [#tpu.dimension_semantics<parallel>, #tpu.dimension_semantics<arbitrary>], iteration_bounds = array<i64: 1, 1>, scalar_prefetch = 0 : i64, scratch_operands = 1 : i64, tpu.core_type = #tpu.core_type<tc>, window_params = [{transform_indices = @transform_0, window_bounds = array<i64: 16, 128>}, {pipeline_mode = #tpu.pipeline_mode<synchronous>, transform_indices = @transform_1, window_bounds = array<i64: 1, 128>}, {pipeline_mode = #tpu.pipeline_mode<synchronous>, transform_indices = @transform_2, window_bounds = array<i64: 1, 128>}, {transform_indices = @transform_3, window_bounds = array<i64: 128, 128>}, {transform_indices = @transform_4, window_bounds = array<i64: 1, 128>}, {transform_indices = @transform_5, window_bounds = array<i64: 16, 128>}]} {
    %c0 = arith.constant 0 : index
    %c0_0 = arith.constant 0 : index
    %0 = vector.load %arg2[%c0, %c0_0] : memref<16x128xf32, #tpu.memory_space<vmem>>, vector<16x128xf32>
    %1 = tpu.iota {dimensions = array<i32: 1>} : vector<1x128xi32>
    %c32_i32 = arith.constant 32 : i32
    %2 = vector.broadcast %c32_i32 : i32 to vector<1x128xi32>
    %3 = arith.cmpi slt, %1, %2 : vector<1x128xi32>
    %cst = arith.constant 0.000000e+00 : f32
    %4 = vector.shape_cast %3 : vector<1x128xi1> to vector<1x128xi1>
    %5 = vector.broadcast %4 : vector<1x128xi1> to vector<16x128xi1>
    %6 = vector.broadcast %cst : f32 to vector<16x128xf32>
    %7 = arith.select %5, %0, %6 : vector<16x128xi1>, vector<16x128xf32>
    %cst_1 = arith.constant dense<0.000000e+00> : vector<16xf32>
    %8 = vector.multi_reduction <add>, %7, %cst_1 [1] : vector<16x128xf32> to vector<16xf32>
    %9 = vector.shape_cast %8 : vector<16xf32> to vector<16x1xf32>
    %10 = arith.mulf %7, %7 : vector<16x128xf32>
    %cst_2 = arith.constant dense<0.000000e+00> : vector<16xf32>
    %11 = vector.multi_reduction <add>, %10, %cst_2 [1] : vector<16x128xf32> to vector<16xf32>
    %12 = vector.shape_cast %11 : vector<16xf32> to vector<16x1xf32>
    %cst_3 = arith.constant 3.125000e-02 : f32
    %13 = vector.broadcast %cst_3 : f32 to vector<16x1xf32>
    %14 = arith.mulf %9, %13 : vector<16x1xf32>
    %15 = arith.mulf %14, %9 : vector<16x1xf32>
    %16 = arith.subf %12, %15 : vector<16x1xf32>
    %cst_4 = arith.constant 0.0322580636 : f32
    %17 = vector.broadcast %cst_4 : f32 to vector<16x1xf32>
    %18 = arith.mulf %16, %17 : vector<16x1xf32>
    %cst_5 = arith.constant 0.000000e+00 : f32
    %19 = vector.broadcast %cst_5 : f32 to vector<16x1xf32>
    %20 = arith.maximumf %18, %19 : vector<16x1xf32>
    %21 = math.sqrt %20 : vector<16x1xf32>
    %cst_6 = arith.constant 9.99999997E-7 : f32
    %22 = vector.broadcast %cst_6 : f32 to vector<16x1xf32>
    %23 = arith.addf %21, %22 : vector<16x1xf32>
    %24 = tpu.reciprocal %23 {approx = true} : vector<16x1xf32> -> vector<16x1xf32>
    %25 = arith.mulf %23, %24 : vector<16x1xf32>
    %cst_7 = arith.constant 2.000000e+00 : f32
    %26 = vector.broadcast %cst_7 : f32 to vector<16x1xf32>
    %27 = arith.subf %26, %25 : vector<16x1xf32>
    %28 = arith.mulf %24, %27 : vector<16x1xf32>
    %c0_8 = arith.constant 0 : index
    %c0_9 = arith.constant 0 : index
    %29 = vector.load %arg3[%c0_8, %c0_9] : memref<1x128xf32, #tpu.memory_space<vmem>>, vector<1x128xf32>
    %30 = vector.broadcast %14 : vector<16x1xf32> to vector<16x128xf32>
    %31 = arith.subf %0, %30 : vector<16x128xf32>
    %32 = vector.broadcast %28 : vector<16x1xf32> to vector<16x128xf32>
    %33 = arith.mulf %31, %32 : vector<16x128xf32>
    %34 = vector.broadcast %29 : vector<1x128xf32> to vector<16x128xf32>
    %35 = arith.mulf %34, %33 : vector<16x128xf32>
    %c0_10 = arith.constant 0 : index
    %c0_11 = arith.constant 0 : index
    %36 = vector.load %arg4[%c0_10, %c0_11] : memref<1x128xf32, #tpu.memory_space<vmem>>, vector<1x128xf32>
    %37 = vector.broadcast %36 : vector<1x128xf32> to vector<16x128xf32>
    %38 = arith.addf %35, %37 : vector<16x128xf32>
    %c0_12 = arith.constant 0 : index
    %c0_13 = arith.constant 0 : index
    %39 = vector.load %arg8[%c0_12, %c0_13] : memref<16x128xf32, #tpu.memory_space<vmem>>, vector<16x128xf32>
    tpu.vector_store %arg8[%c0_12, %c0_13], %38 {strides = array<i32>} : memref<16x128xf32, #tpu.memory_space<vmem>>, vector<16x128xf32>,
    %c0_14 = arith.constant 0 : index
    %c0_15 = arith.constant 0 : index
    %40 = vector.load %arg2[%c0_14, %c0_15] : memref<16x128xf32, #tpu.memory_space<vmem>>, vector<16x128xf32>
    %c0_16 = arith.constant 0 : index
    %c0_17 = arith.constant 0 : index
    %41 = vector.load %arg8[%c0_16, %c0_17] : memref<16x128xf32, #tpu.memory_space<vmem>>, vector<16x128xf32>
    %c0_18 = arith.constant 0 : index
    %c0_19 = arith.constant 0 : index
    %42 = vector.load %arg5[%c0_18, %c0_19] : memref<128x128xf32, #tpu.memory_space<vmem>>, vector<128x128xf32>
    %cst_20 = arith.constant dense<0.000000e+00> : vector<16x128xf32>
    %43 = tpu.matmul %41, %42, %cst_20 {dimension_numbers = #tpu.dot_dimension_numbers<[1], [0], [0], [1], [0, 0, 1, 1], [], []>} : vector<16x128xf32>, vector<128x128xf32>, vector<16x128xf32> -> vector<16x128xf32>
    %c0_21 = arith.constant 0 : index
    %c0_22 = arith.constant 0 : index
    %44 = vector.load %arg6[%c0_21, %c0_22] : memref<1x128xf32, #tpu.memory_space<vmem>>, vector<1x128xf32>
    %45 = vector.broadcast %44 : vector<1x128xf32> to vector<16x128xf32>
    %46 = arith.addf %43, %45 : vector<16x128xf32>
    %47 = arith.addf %40, %46 : vector<16x128xf32>
    %c0_23 = arith.constant 0 : index
    %c0_24 = arith.constant 0 : index
    %48 = vector.load %arg7[%c0_23, %c0_24] : memref<16x128xf32, #tpu.memory_space<vmem>>, vector<16x128xf32>
    tpu.vector_store %arg7[%c0_23, %c0_24], %47 {strides = array<i32>} : memref<16x128xf32, #tpu.memory_space<vmem>>, vector<16x128xf32>,
    return
  }
  func.func @transform_0(%arg0: i32, %arg1: i32) -> (i32, i32) {
    %c0_i32 = arith.constant 0 : i32
    %c0_i32_0 = arith.constant 0 : i32
    return %arg0, %c0_i32 : i32, i32
  }
  func.func @transform_1(%arg0: i32, %arg1: i32) -> (i32, i32) {
    %c0_i32 = arith.constant 0 : i32
    %c0_i32_0 = arith.constant 0 : i32
    %c0_i32_1 = arith.constant 0 : i32
    return %c0_i32, %c0_i32_0 : i32, i32
  }
  func.func @transform_2(%arg0: i32, %arg1: i32) -> (i32, i32) {
    %c0_i32 = arith.constant 0 : i32
    %c0_i32_0 = arith.constant 0 : i32
    %c0_i32_1 = arith.constant 0 : i32
    return %c0_i32, %c0_i32_0 : i32, i32
  }
  func.func @transform_3(%arg0: i32, %arg1: i32) -> (i32, i32) {
    %c0_i32 = arith.constant 0 : i32
    %c0_i32_0 = arith.constant 0 : i32
    return %c0_i32, %arg1 : i32, i32
  }
  func.func @transform_4(%arg0: i32, %arg1: i32) -> (i32, i32) {
    %c0_i32 = arith.constant 0 : i32
    %c0_i32_0 = arith.constant 0 : i32
    return %c0_i32, %arg1 : i32, i32
  }
  func.func @transform_5(%arg0: i32, %arg1: i32) -> (i32, i32) {
    %c0_i32 = arith.constant 0 : i32
    return %arg0, %arg1 : i32, i32
  }
}

</mosaic_0001>

<llo_original>
// kernel: tpu_custom_call.1
$region0: #{tpu_custom_call.1}
  #allocation0 [shape = 'u32[]', space=smem, size = 0x4, offset = 0x4, fixed_abs, tag = 'smem constant byte address 0x4 - core index']
  #allocation1 [shape = 'u32[144,128]{1,0:T(1,128)}', space=vmem, size = 0x12000, scoped, tag = 'internal scratch']
  #allocation2 [shape = 'f32[16,128]{1,0:T(8,128)}', space=vmem, size = 0x2000, scoped, tag = 'scratch operand']
  %s0 = inlined_call_operand.hbm [shape: f32[16,128], index: 0, kind: input, shape index: {}, may-alias: {0,5}]
  %s1 = inlined_call_operand.vmem [shape: f32[1,128], index: 1, kind: input, shape index: {}]
  %s2 = inlined_call_operand.vmem [shape: f32[1,128], index: 2, kind: input, shape index: {}]
  %s3 = inlined_call_operand.hbm [shape: f32[128,128], index: 3, kind: input, shape index: {}]
  %s4 = inlined_call_operand.vmem [shape: f32[1,128], index: 4, kind: input, shape index: {}]
  %s5 = inlined_call_operand.hbm [shape: f32[16,128], index: 5, kind: output, shape index: {}, may-alias: {0,5}]
  %s6 = sld [smem:[#allocation0]]
  $region38: #{tpu_custom_call.1} parent=0
    _
  %s8 = ssub.s32 1, %s6
  %s9 = scalar_select 0, %s8, %s6
  $region1: #{tpu_custom_call.1} parent=0
    #allocation3 [shape = 'u8[8192]{0}', space=vmem, size = 0x2000, scoped, tag = 'input window, operand 0, single buffered']
    #allocation4 [shape = 's32[1]{0}', space=sflag, size = 0x4, scoped, tag = 'scoped memory for tpu_custom_call.1']
    #allocation5 [shape = 's32[1]{0}', space=sflag, size = 0x4, scoped, tag = 'scoped memory for tpu_custom_call.1']
    #allocation6 [shape = 'u8[65536]{0}', space=vmem, size = 0x10000, scoped, tag = 'input window, operand 3, single buffered']
    #allocation7 [shape = 's32[1]{0}', space=sflag, size = 0x4, scoped, tag = 'scoped memory for tpu_custom_call.1']
    #allocation8 [shape = 'u8[8192]{0}', space=vmem, size = 0x2000, scoped, tag = 'output window, operand 0, single buffered']
    %10 = vsyncpa [#allocation4], 0
    %11 = vsyncpa [#allocation7], 0
    %12 = vsyncpa [#allocation5], 0
    // Predicated region
    $region2: #{tpu_custom_call.1} parent=1 // pred_check
      _
    $region3: #{tpu_custom_call.1} parent=1 // pred_check_branch
      %14 = sbr.rel (0) target = $region5
    $region4: #{tpu_custom_call.1} parent=1 // pred_region
      %s16 = ssub.s32 256, 256
      %17 = vsyncadd [#allocation4], %s16
      %s18 = sshll.u32 [#allocation3], 4
      %s19 = int_to_ptr.vmem [resolvable:$true] %s18
      %24 = dma.hbm_to_vmem [thread:$0]  %s0, 256, %s19, [#allocation4], 128, 128, 8
    $region5: #{tpu_custom_call.1} parent=1 // pred_fallthru
      _
    // Predicated region
    $region6: #{tpu_custom_call.1} parent=1 // pred_check
      _
    $region7: #{tpu_custom_call.1} parent=1 // pred_check_branch
      %26 = sbr.rel (0) target = $region9
    $region8: #{tpu_custom_call.1} parent=1 // pred_region
      _
    $region9: #{tpu_custom_call.1} parent=1 // pred_fallthru
      _
    // Predicated region
    $region10: #{tpu_custom_call.1} parent=1 // pred_check
      _
    $region11: #{tpu_custom_call.1} parent=1 // pred_check_branch
      %28 = sbr.rel (0) target = $region13
    $region12: #{tpu_custom_call.1} parent=1 // pred_region
      _
    $region13: #{tpu_custom_call.1} parent=1 // pred_fallthru
      _
    // Predicated region
    $region14: #{tpu_custom_call.1} parent=1 // pred_check
      _
    $region15: #{tpu_custom_call.1} parent=1 // pred_check_branch
      %30 = sbr.rel (0) target = $region17
    $region16: #{tpu_custom_call.1} parent=1 // pred_region
      %s32 = ssub.s32 2048, 2048
      %33 = vsyncadd [#allocation7], %s32
      %s34 = sshll.u32 [#allocation6], 4
      %s35 = int_to_ptr.vmem [resolvable:$true] %s34
      %40 = dma.hbm_to_vmem [thread:$0]  %s3, 2048, %s35, [#allocation7], 128, 128, 8
    $region17: #{tpu_custom_call.1} parent=1 // pred_fallthru
      _
    // Predicated region
    $region18: #{tpu_custom_call.1} parent=1 // pred_check
      _
    $region19: #{tpu_custom_call.1} parent=1 // pred_check_branch
      %42 = sbr.rel (0) target = $region21
    $region20: #{tpu_custom_call.1} parent=1 // pred_region
      _
    $region21: #{tpu_custom_call.1} parent=1 // pred_fallthru
      _
    // Predicated region
    $region22: #{tpu_custom_call.1} parent=1 // pred_check
      _
    $region23: #{tpu_custom_call.1} parent=1 // pred_check_branch
      %44 = sbr.rel (0) target = $region25
    $region24: #{tpu_custom_call.1} parent=1 // pred_region
      %45 = dma.done [#allocation4], 256
    $region25: #{tpu_custom_call.1} parent=1 // pred_fallthru
      _
    // Predicated region
    $region26: #{tpu_custom_call.1} parent=1 // pred_check
      _
    $region27: #{tpu_custom_call.1} parent=1 // pred_check_branch
      %47 = sbr.rel (0) target = $region29
    $region28: #{tpu_custom_call.1} parent=1 // pred_region
      %48 = dma.done [#allocation7], 2048
    $region29: #{tpu_custom_call.1} parent=1 // pred_fallthru
      _
    %v49 = vld [vmem:[#allocation3] sm:$0xff]
    %v50 = vld [vmem:[#allocation3 + $0x8] sm:$0xff]
    %v51 = vlaneseq
    %v52 = vand.u32 %v51, 127
    %vm53 = vcmp.lt.s32.totalorder %v52, 32
    %v54 = vsel %vm53, 1, 0
    %vm55 = vcmp.eq.s32.totalorder %v54, 1
    %v56 = vsel %vm55, %v49, 0.0
    %v57 = vsel %vm55, %v50, 0.0
    %58 = vadd.xlane.f32.xlu0 %v56
    %v59 = vpop.xlane.xlu0 %58
    %60 = vadd.xlane.f32.xlu0 %v57
    %v61 = vpop.xlane.xlu0 %60
    %v62 = vmul.f32 %v56, %v56
    %v63 = vmul.f32 %v57, %v57
    %64 = vadd.xlane.f32.xlu0 %v62
    %v65 = vpop.xlane.xlu0 %64
    %66 = vadd.xlane.f32.xlu0 %v63
    %v67 = vpop.xlane.xlu0 %66
    %v68 = vmul.f32 %v59, 0.03125
    %v69 = vmul.f32 %v61, 0.03125
    %v70 = vmul.f32 %v68, %v59
    %v71 = vmul.f32 %v69, %v61
    %v72 = vsub.f32 %v65, %v70
    %v73 = vsub.f32 %v67, %v71
    %v74 = vmul.f32 %v72, 0.032258064
    %v75 = vmul.f32 %v73, 0.032258064
    %v76 = vmax.f32 %v74, 0.0
    %v77 = vmax.f32 %v75, 0.0
    %v78 = vrsqrt.pop %v76
    %v79 = vmul.f32 %v76, %v78
    %vm80 = vcmp.eq.f32.partialorder %v76, inf
    %v81 = vsel %vm80, %v76, %v79
    %vm82 = vcmp.eq.f32.partialorder %v76, 0.0
    %v83 = vand.u32 %v76, 2147483648
    %v84 = vsel %vm82, %v83, %v81
    %v85 = vrsqrt.pop %v77
    %v86 = vmul.f32 %v77, %v85
    %vm87 = vcmp.eq.f32.partialorder %v77, inf
    %v88 = vsel %vm87, %v77, %v86
    %vm89 = vcmp.eq.f32.partialorder %v77, 0.0
    %v90 = vand.u32 %v77, 2147483648
    %v91 = vsel %vm89, %v90, %v88
    %v92 = vadd.f32 %v84, 1e-06
    %v93 = vadd.f32 %v91, 1e-06
    %v94 = vrcp.pop %v92
    %v95 = vrcp.pop %v93
    %v96 = vmul.f32 %v92, %v94
    %v97 = vmul.f32 %v93, %v95
    %v98 = vsub.f32 2.0, %v96
    %v99 = vsub.f32 2.0, %v97
    %v100 = vmul.f32 %v94, %v98
    %v101 = vmul.f32 %v95, %v99
    %v102 = vld [vmem:[%s1] sm:$0x1]
    %v103 = vsub.f32 %v49, %v68
    %v104 = vsub.f32 %v50, %v69
    %v105 = vmul.f32 %v103, %v100
    %v106 = vmul.f32 %v104, %v101
    %v108 = vlaneseq
    %v109 = vshrl.u32 %v108, 7
    %v110 = vsub.s32 0, %v109
    %v111 = vrot.slane %v102, %v110
    %v113 = vmul.f32 %v111, %v105
    %v114 = vmul.f32 %v111, %v106
    %v115 = vld [vmem:[%s2] sm:$0x1]
    %v117 = vlaneseq
    %v118 = vshrl.u32 %v117, 7
    %v119 = vsub.s32 0, %v118
    %v120 = vrot.slane %v115, %v119
    %v122 = vadd.f32 %v113, %v120
    %v123 = vadd.f32 %v114, %v120
    %124 = vst [vmem:[#allocation2] sm:$0xff] %v122
    %125 = vst [vmem:[#allocation2 + $0x8] sm:$0xff] %v123
    %v126 = vld [vmem:[#allocation3] sm:$0xff]
    %v127 = vld [vmem:[#allocation3 + $0x8] sm:$0xff]
    %v128 = vld [vmem:[#allocation2] sm:$0xff]
    %v129 = vld [vmem:[#allocation2 + $0x8] sm:$0xff]
    %v130 = vld [vmem:[#allocation6] sm:$0xff]
    %v131 = vld [vmem:[#allocation6 + $0x8] sm:$0xff]
    %v132 = vld [vmem:[#allocation6 + $0x10] sm:$0xff]
    %v133 = vld [vmem:[#allocation6 + $0x18] sm:$0xff]
    %v134 = vld [vmem:[#allocation6 + $0x20] sm:$0xff]
    %v135 = vld [vmem:[#allocation6 + $0x28] sm:$0xff]
    %v136 = vld [vmem:[#allocation6 + $0x30] sm:$0xff]
    %v137 = vld [vmem:[#allocation6 + $0x38] sm:$0xff]
    %v138 = vld [vmem:[#allocation6 + $0x40] sm:$0xff]
    %v139 = vld [vmem:[#allocation6 + $0x48] sm:$0xff]
    %v140 = vld [vmem:[#allocation6 + $0x50] sm:$0xff]
    %v141 = vld [vmem:[#allocation6 + $0x58] sm:$0xff]
    %v142 = vld [vmem:[#allocation6 + $0x60] sm:$0xff]
    %v143 = vld [vmem:[#allocation6 + $0x68] sm:$0xff]
    %v144 = vld [vmem:[#allocation6 + $0x70] sm:$0xff]
    %v145 = vld [vmem:[#allocation6 + $0x78] sm:$0xff]
    %v146 = vld [vmem:[%s4] sm:$0x1]
    %v148 = vlaneseq
    %v149 = vshrl.u32 %v148, 7
    %v150 = vsub.s32 0, %v149
    %v151 = vrot.slane %v146, %v150
    %153 = vmatprep.subr.mxu0 0.0
    %154 = vmatpush1.msra.mxu0 %v145
    %155 = vmatprep.subr.mxu0 0.0
    %156 = vmatpush1.msra.mxu0 %v144
    %157 = vmatprep.subr.mxu0 0.0
    %158 = vmatpush1.msra.mxu0 %v143
    %159 = vmatprep.subr.mxu0 0.0
    %160 = vmatpush1.msra.mxu0 %v142
    %161 = vmatprep.subr.mxu0 0.0
    %162 = vmatpush1.msra.mxu0 %v141
    %163 = vmatprep.subr.mxu0 0.0
    %164 = vmatpush1.msra.mxu0 %v140
    %165 = vmatprep.subr.mxu0 0.0
    %166 = vmatpush1.msra.mxu0 %v139
    %167 = vmatprep.subr.mxu0 0.0
    %168 = vmatpush1.msra.mxu0 %v138
    %169 = vmatprep.subr.mxu0 0.0
    %170 = vmatpush1.msra.mxu0 %v137
    %171 = vmatprep.subr.mxu0 0.0
    %172 = vmatpush1.msra.mxu0 %v136
    %173 = vmatprep.subr.mxu0 0.0
    %174 = vmatpush1.msra.mxu0 %v135
    %175 = vmatprep.subr.mxu0 0.0
    %176 = vmatpush1.msra.mxu0 %v134
    %177 = vmatprep.subr.mxu0 0.0
    %178 = vmatpush1.msra.mxu0 %v133
    %179 = vmatprep.subr.mxu0 0.0
    %180 = vmatpush1.msra.mxu0 %v132
    %181 = vmatprep.subr.mxu0 0.0
    %182 = vmatpush1.msra.mxu0 %v131
    %183 = vmatprep.subr.mxu0 0.0
    %184 = vmatpush1.msra.mxu0 %v130
    %185 = vmatprep.subr.mxu0 0.0
    %186 = vmatpush2.msra.mxu0 0.0
    %187 = vmatprep.subr.mxu0 0.0
    %188 = vmatpush2.msra.mxu0 0.0
    %189 = vmatprep.subr.mxu0 0.0
    %190 = vmatpush2.msra.mxu0 0.0
    %191 = vmatprep.subr.mxu0 0.0
    %192 = vmatpush2.msra.mxu0 0.0
    %193 = vmatprep.subr.mxu0 0.0
    %194 = vmatpush2.msra.mxu0 0.0
    %195 = vmatprep.subr.mxu0 0.0
    %196 = vmatpush2.msra.mxu0 0.0
    %197 = vmatprep.subr.mxu0 0.0
    %198 = vmatpush2.msra.mxu0 0.0
    %199 = vmatprep.subr.mxu0 0.0
    %200 = vmatpush2.msra.mxu0 0.0
    %201 = vmatprep.subr.mxu0 0.0
    %202 = vmatpush2.msra.mxu0 0.0
    %203 = vmatprep.subr.mxu0 0.0
    %204 = vmatpush2.msra.mxu0 0.0
    %205 = vmatprep.subr.mxu0 0.0
    %206 = vmatpush2.msra.mxu0 0.0
    %207 = vmatprep.subr.mxu0 0.0
    %208 = vmatpush2.msra.mxu0 0.0
    %209 = vmatprep.subr.mxu0 0.0
    %210 = vmatpush2.msra.mxu0 0.0
    %211 = vmatprep.subr.mxu0 0.0
    %212 = vmatpush2.msra.mxu0 0.0
    %213 = vmatprep.subr.mxu0 0.0
    %214 = vmatpush2.msra.mxu0 0.0
    %215 = vmatprep.subr.mxu0 0.0
    %216 = vmatpush2.msra.mxu0 0.0
    %217 = vmatprep.mubr.f32.mxu0 0.0
    %218 = vmatmul.mubr.f32.gmra.mxu0 %v128
    %v219 = vpop.f32.mrf.mxu0
    %v220 = vadd.f32 %v151, %v219
    %v221 = vpop.f32.mrf.mxu0
    %222 = vmatprep.mubr.f32.mxu0 0.0
    %223 = vmatmul.mubr.f32.gmra.mxu0 %v129
    %v224 = vpop.f32.mrf.mxu0
    %v225 = vadd.f32 %v151, %v224
    %v226 = vpop.f32.mrf.mxu0
    %227 = vdwg.mxu0
    %v228 = vadd.f32 %v126, %v220
    %v229 = vadd.f32 %v127, %v225
    %230 = vst [vmem:[#allocation8] sm:$0xff] %v228
    %231 = vst [vmem:[#allocation8 + $0x8] sm:$0xff] %v229
    // Predicated region
    $region30: #{tpu_custom_call.1} parent=1 // pred_check
      _
    $region31: #{tpu_custom_call.1} parent=1 // pred_check_branch
      %233 = sbr.rel (0) target = $region33
    $region32: #{tpu_custom_call.1} parent=1 // pred_region
      %s235 = ssub.s32 256, 256
      %236 = vsyncadd [#allocation5], %s235
      %s237 = sshll.u32 [#allocation8], 4
      %s238 = int_to_ptr.vmem [resolvable:$true] %s237
      %243 = dma.vmem_to_hbm [thread:$0]  %s238, 256, %s5, [#allocation5], 128, 128, 8
    $region33: #{tpu_custom_call.1} parent=1 // pred_fallthru
      _
    // Predicated region
    $region34: #{tpu_custom_call.1} parent=1 // pred_check
      _
    $region35: #{tpu_custom_call.1} parent=1 // pred_check_branch
      %245 = sbr.rel (0) target = $region37
    $region36: #{tpu_custom_call.1} parent=1 // pred_region
      %246 = dma.done [#allocation5], 256
    $region37: #{tpu_custom_call.1} parent=1 // pred_fallthru
      _
    %247 = vsyncpa [#allocation4], 1
    %248 = vsyncpa [#allocation7], 1
    %249 = vsyncpa [#allocation5], 1

</llo_original>
